<compile_context>
chip_gen: v5e
topology: v5e:2x2
jax: 0.10.0
libtpu: 0.0.40
codegen_flags: <defaults>
</compile_context>

<pallas_src>
from functools import partial

import numpy as np
import jax
import jax.numpy as jnp
from jax.experimental import pallas as pl
from jax.experimental.pallas import tpu as pltpu


def _multiscale_loss_kernel(norm, out_ref, tgt_ref, pool_ref, cvec_ref, p0_ref, p1_ref):
    """One grid step processes a (tile_bc, H*W) slab of both inputs.

    p0_ref (1, 1, H*W): sum over the tile's rows of elem(d)              -- scale 0
    p1_ref (1, 1, P)  : sum over the tile's rows of elem(d @ M) * cvec   -- scales >= 1
    """
    d = out_ref[...].astype(jnp.float32) - tgt_ref[...].astype(jnp.float32)

    def elem(x):
        return jnp.abs(x) if norm == "L1" else x * x  # 'L1' -> L1Loss, 'L2' -> MSELoss

    # Scale 0 (AvgPool2d(1,1) == identity): lane-dense partial, sublane reduction only.
    p0_ref[...] = jnp.sum(elem(d), axis=0, keepdims=True).reshape(p0_ref.shape)

    # Scales >= 1: every window sum of every scale in one MXU matmul (K=H*W, N=P_pad).
    # Weights / window averaging / mean's 1/N are folded into cvec (0 on padded columns).
    pooled = jnp.dot(d, pool_ref[...], preferred_element_type=jnp.float32)
    p1_ref[...] = jnp.sum(elem(pooled) * cvec_ref[...], axis=0,
                          keepdims=True).reshape(p1_ref.shape)


def _build_pooling_matrix(h, w, scales, norm, n_total_images):
    """0/1 window-membership matrix (H*W, P_pad) + folded per-column constants (1, P_pad)."""
    hw = h * w
    cols, consts = [], []
    for s in range(1, scales):
        k = 2 ** s
        hs, ws = h // k, w // k                     # floor: incomplete windows dropped
        weight = 1.0 / (2 ** s)
        n_elems = n_total_images * hs * ws          # global N of the pooled tensor
        corr = float(k * k) if norm == "L1" else float((k * k) ** 2)
        const = weight / (n_elems * corr)
        for i in range(hs):
            for j in range(ws):
                col = np.zeros((hw,), np.float32)
                rr = np.arange(i * k, (i + 1) * k)
                cc = np.arange(j * k, (j + 1) * k)
                col[(rr[:, None] * w + cc[None, :]).reshape(-1)] = 1.0
                cols.append(col)
                consts.append(const)
    p = len(cols)
    p_pad = max(128, pl.cdiv(max(p, 1), 128) * 128)
    m = np.zeros((hw, p_pad), np.float32)
    if p:
        m[:, :p] = np.stack(cols, axis=1)
    cvec = np.zeros((1, p_pad), np.float32)
    cvec[0, :p] = np.asarray(consts, np.float32)
    return m, cvec


def _vmem_capacity_bytes():
    cap = 64 * 1024 * 1024  # conservative default = v7x per-TensorCore VMEM
    try:
        info = pltpu.get_tpu_info()
        cap = int(getattr(info, "vmem_capacity_bytes", cap)) or cap
    except Exception:
        pass
    return cap


def _pick_tile_bc(bc, hw, itemsize, budget_bytes, min_tiles=4):
    """Largest multiple-of-8 divisor of bc whose (8,128)-padded footprint fits the budget."""
    lanes = pl.cdiv(hw, 128) * 128                  # lane padding of the (tile_bc, HW) block
    # 2 inputs x 2 pipeline buffers in native dtype + ~3 f32 temporaries per BC row.
    per_bc = lanes * (4 * itemsize + 12)
    cap = max(1, int(budget_bytes) // int(per_bc))
    if bc // min_tiles >= 8:
        cap = min(cap, bc // min_tiles)             # keep >= min_tiles grid steps (pipelining,
    cands = [t for t in range(8, bc + 1, 8) if bc % t == 0]   # both v7x TensorCores)
    if not cands:
        return bc                                   # tiny / awkward bc: one full (aligned) block
    fitting = [t for t in cands if t <= cap]
    return max(fitting) if fitting else cands[0]


def multiscale_loss(output, target, scales=3, norm="L1", min_tiles=4):
    """Pallas TPU implementation of MultiScaleLoss.forward. Inputs are NCHW."""
    assert output.shape == target.shape, "output/target shape mismatch"
    assert output.dtype == target.dtype, "output/target dtype mismatch"
    assert norm in ("L1", "L2"), f"unsupported norm {norm!r}"
    b, c, h, w = output.shape
    assert h // (2 ** (scales - 1)) >= 1 and w // (2 ** (scales - 1)) >= 1, (
        "pooled spatial size would be zero (PyTorch AvgPool2d would also fail)")
    bc, hw = b * c, h * w
    # TODO(synk): the fused (H*W, P) pooling matrix targets the small spatial dims this
    # module is used with; very large images would need a hierarchical per-scale path.
    assert hw <= 16 * 1024, "fused pooling-matrix path is intended for small spatial dims"

    # Metadata-only reshape (HW contiguous): lane dimension becomes H*W -> lane-dense blocks.
    out_f = output.reshape(bc, hw)
    tgt_f = target.reshape(bc, hw)

    pool_np, cvec_np = _build_pooling_matrix(h, w, scales, norm, bc)
    p_pad = pool_np.shape[1]
    pool_m = jnp.asarray(pool_np)
    cvec = jnp.asarray(cvec_np)

    itemsize = jnp.dtype(output.dtype).itemsize
    cap = _vmem_capacity_bytes()
    m_bytes = pool_np.size * 4
    budget = max(4 << 20, int(cap * 0.35) - 2 * m_bytes)
    tile_bc = _pick_tile_bc(bc, hw, itemsize, budget, min_tiles)
    num_tiles = bc // tile_bc
    vmem_limit = int(min(max(cap * 0.6, 32 * 1024 * 1024), 100 * 1024 * 1024))

    # Advisory cost estimate: this kernel is HBM-bound.
    flops = 2 * bc * hw * p_pad + 4 * bc * hw + 3 * bc * p_pad
    bytes_accessed = (2 * bc * hw * itemsize + m_bytes + 4 * p_pad
                      + num_tiles * (hw + p_pad) * 4)
    cost = pl.CostEstimate(flops=int(flops), transcendentals=0,
                           bytes_accessed=int(bytes_accessed))

    kernel = partial(_multiscale_loss_kernel, norm)
    p0, p1 = pl.pallas_call(
        kernel,
        out_shape=(jax.ShapeDtypeStruct((num_tiles, 1, hw), jnp.float32),
                   jax.ShapeDtypeStruct((num_tiles, 1, p_pad), jnp.float32)),
        grid=(num_tiles,),
        in_specs=[
            pl.BlockSpec((tile_bc, hw), lambda i: (i, 0)),
            pl.BlockSpec((tile_bc, hw), lambda i: (i, 0)),
            pl.BlockSpec((hw, p_pad), lambda i: (0, 0)),   # constant block: fetched once
            pl.BlockSpec((1, p_pad), lambda i: (0, 0)),
        ],
        out_specs=(
            pl.BlockSpec((1, 1, hw), lambda i: (i, 0, 0)),
            pl.BlockSpec((1, 1, p_pad), lambda i: (i, 0, 0)),
        ),
        compiler_params=pltpu.CompilerParams(
            dimension_semantics=("parallel",),
            vmem_limit_bytes=vmem_limit,
        ),
        cost_estimate=cost,
    )(out_f, tgt_f, pool_m, cvec)

    # Tiny final reduction of the lane-dense per-tile partials outside the kernel.
    c0 = 1.0 / (bc * hw)   # weight_0 == 1, mean over all BC*H*W elements (scale 0)
    return c0 * jnp.sum(p0) + jnp.sum(p1)


def _reference_loss(output, target, scales=3, norm="L1"):
    """Pure-JAX reference mirroring the PyTorch module."""
    b, c, h, w = output.shape
    total = 0.0
    for s in range(scales):
        k = 2 ** s
        hk, wk = h // k, w // k

        def pool(x):
            x = x[:, :, : hk * k, : wk * k]
            return x.reshape(b, c, hk, k, wk, k).mean(axis=(3, 5))

        diff = pool(output) - pool(target)
        l = jnp.mean(jnp.abs(diff)) if norm == "L1" else jnp.mean(diff * diff)
        total = total + (1.0 / 2 ** s) * l
    return total


if __name__ == "__main__":
    key = jax.random.PRNGKey(0)
    k1, k2 = jax.random.split(key)

    # Case 1: shapes implied by the module (B=2, C=4, 16x16), L1 and L2.
    B, C, H, W = 2, 4, 16, 16
    output = jax.random.normal(k1, (B, C, H, W), dtype=jnp.float32)
    target = jax.random.normal(k2, (B, C, H, W), dtype=jnp.float32)

    loss = jax.block_until_ready(multiscale_loss(output, target, scales=3, norm="L1"))
    ref = _reference_loss(output, target, scales=3, norm="L1")
    assert jnp.allclose(loss, ref, atol=1e-4, rtol=1e-4), (loss, ref)

    loss_l2 = jax.block_until_ready(multiscale_loss(output, target, scales=3, norm="L2"))
    ref_l2 = _reference_loss(output, target, scales=3, norm="L2")
    assert jnp.allclose(loss_l2, ref_l2, atol=1e-4, rtol=1e-4), (loss_l2, ref_l2)

    # Case 2: non-divisible spatial dims (incomplete windows dropped) and a multi-tile
    # grid (BC=32 -> 4 tiles of 8) exercising the pipelined / parallel path.
    k3, k4 = jax.random.split(k1)
    B2, C2, H2, W2 = 4, 8, 18, 20
    out2 = jax.random.normal(k3, (B2, C2, H2, W2), dtype=jnp.float32)
    tgt2 = jax.random.normal(k4, (B2, C2, H2, W2), dtype=jnp.float32)
    loss2 = jax.block_until_ready(multiscale_loss(out2, tgt2, scales=3, norm="L1"))
    ref2 = _reference_loss(out2, tgt2, scales=3, norm="L1")
    assert jnp.allclose(loss2, ref2, atol=1e-4, rtol=1e-4), (loss2, ref2)

    print("KERNEL_OK")
</pallas_src>

<mosaic_0001>
module attributes {stable_mosaic.version = 11 : i64} {
  func.func @_multiscale_loss_kernel(%arg0: i32, %arg1: memref<8x256xf32, #tpu.memory_space<vmem>>, %arg2: memref<8x256xf32, #tpu.memory_space<vmem>>, %arg3: memref<256x128xf32, #tpu.memory_space<vmem>>, %arg4: memref<1x128xf32, #tpu.memory_space<vmem>>, %arg5: memref<1x1x256xf32, #tpu.memory_space<vmem>>, %arg6: memref<1x1x128xf32, #tpu.memory_space<vmem>>) attributes {dimension_semantics = [#tpu.dimension_semantics<parallel>], iteration_bounds = array<i64: 1>, scalar_prefetch = 0 : i64, scratch_operands = 0 : i64, tpu.core_type = #tpu.core_type<tc>, window_params = [{transform_indices = @transform_0, window_bounds = array<i64: 8, 256>}, {transform_indices = @transform_1, window_bounds = array<i64: 8, 256>}, {pipeline_mode = #tpu.pipeline_mode<synchronous>, transform_indices = @transform_2, window_bounds = array<i64: 256, 128>}, {pipeline_mode = #tpu.pipeline_mode<synchronous>, transform_indices = @transform_3, window_bounds = array<i64: 1, 128>}, {transform_indices = @transform_4, window_bounds = array<i64: 1, 1, 256>}, {transform_indices = @transform_5, window_bounds = array<i64: 1, 1, 128>}]} {
    %c0 = arith.constant 0 : index
    %c0_0 = arith.constant 0 : index
    %0 = vector.load %arg1[%c0, %c0_0] : memref<8x256xf32, #tpu.memory_space<vmem>>, vector<8x256xf32>
    %c0_1 = arith.constant 0 : index
    %c0_2 = arith.constant 0 : index
    %1 = vector.load %arg2[%c0_1, %c0_2] : memref<8x256xf32, #tpu.memory_space<vmem>>, vector<8x256xf32>
    %2 = arith.subf %0, %1 : vector<8x256xf32>
    %3 = math.absf %2 : vector<8x256xf32>
    %cst = arith.constant dense<0.000000e+00> : vector<256xf32>
    %4 = vector.multi_reduction <add>, %3, %cst [0] : vector<8x256xf32> to vector<256xf32>
    %5 = vector.shape_cast %4 : vector<256xf32> to vector<1x256xf32>
    %6 = vector.shape_cast %5 : vector<1x256xf32> to vector<1x1x256xf32>
    %c0_3 = arith.constant 0 : index
    %c0_4 = arith.constant 0 : index
    %c0_5 = arith.constant 0 : index
    %7 = vector.load %arg5[%c0_3, %c0_4, %c0_5] : memref<1x1x256xf32, #tpu.memory_space<vmem>>, vector<1x1x256xf32>
    tpu.vector_store %arg5[%c0_3, %c0_4, %c0_5], %6 {strides = array<i32>} : memref<1x1x256xf32, #tpu.memory_space<vmem>>, vector<1x1x256xf32>,
    %c0_6 = arith.constant 0 : index
    %c0_7 = arith.constant 0 : index
    %8 = vector.load %arg3[%c0_6, %c0_7] : memref<256x128xf32, #tpu.memory_space<vmem>>, vector<256x128xf32>
    %cst_8 = arith.constant dense<0.000000e+00> : vector<8x128xf32>
    %9 = tpu.matmul %2, %8, %cst_8 {dimension_numbers = #tpu.dot_dimension_numbers<[1], [0], [0], [1], [0, 0, 1, 1], [], []>} : vector<8x256xf32>, vector<256x128xf32>, vector<8x128xf32> -> vector<8x128xf32>
    %10 = math.absf %9 : vector<8x128xf32>
    %c0_9 = arith.constant 0 : index
    %c0_10 = arith.constant 0 : index
    %11 = vector.load %arg4[%c0_9, %c0_10] : memref<1x128xf32, #tpu.memory_space<vmem>>, vector<1x128xf32>
    %12 = vector.broadcast %11 : vector<1x128xf32> to vector<8x128xf32>
    %13 = arith.mulf %10, %12 : vector<8x128xf32>
    %cst_11 = arith.constant dense<0.000000e+00> : vector<128xf32>
    %14 = vector.multi_reduction <add>, %13, %cst_11 [0] : vector<8x128xf32> to vector<128xf32>
    %15 = vector.shape_cast %14 : vector<128xf32> to vector<1x128xf32>
    %16 = vector.shape_cast %15 : vector<1x128xf32> to vector<1x1x128xf32>
    %c0_12 = arith.constant 0 : index
    %c0_13 = arith.constant 0 : index
    %c0_14 = arith.constant 0 : index
    %17 = vector.load %arg6[%c0_12, %c0_13, %c0_14] : memref<1x1x128xf32, #tpu.memory_space<vmem>>, vector<1x1x128xf32>
    tpu.vector_store %arg6[%c0_12, %c0_13, %c0_14], %16 {strides = array<i32>} : memref<1x1x128xf32, #tpu.memory_space<vmem>>, vector<1x1x128xf32>,
    return
  }
  func.func @transform_0(%arg0: i32) -> (i32, i32) {
    %c0_i32 = arith.constant 0 : i32
    %c0_i32_0 = arith.constant 0 : i32
    return %arg0, %c0_i32 : i32, i32
  }
  func.func @transform_1(%arg0: i32) -> (i32, i32) {
    %c0_i32 = arith.constant 0 : i32
    %c0_i32_0 = arith.constant 0 : i32
    return %arg0, %c0_i32 : i32, i32
  }
  func.func @transform_2(%arg0: i32) -> (i32, i32) {
    %c0_i32 = arith.constant 0 : i32
    %c0_i32_0 = arith.constant 0 : i32
    %c0_i32_1 = arith.constant 0 : i32
    return %c0_i32, %c0_i32_0 : i32, i32
  }
  func.func @transform_3(%arg0: i32) -> (i32, i32) {
    %c0_i32 = arith.constant 0 : i32
    %c0_i32_0 = arith.constant 0 : i32
    %c0_i32_1 = arith.constant 0 : i32
    return %c0_i32, %c0_i32_0 : i32, i32
  }
  func.func @transform_4(%arg0: i32) -> (i32, i32, i32) {
    %c0_i32 = arith.constant 0 : i32
    %c0_i32_0 = arith.constant 0 : i32
    %c0_i32_1 = arith.constant 0 : i32
    return %arg0, %c0_i32, %c0_i32_0 : i32, i32, i32
  }
  func.func @transform_5(%arg0: i32) -> (i32, i32, i32) {
    %c0_i32 = arith.constant 0 : i32
    %c0_i32_0 = arith.constant 0 : i32
    %c0_i32_1 = arith.constant 0 : i32
    return %arg0, %c0_i32, %c0_i32_0 : i32, i32, i32
  }
}

</mosaic_0001>

<llo_original>
// kernel: tpu_custom_call.1
$region0: #{tpu_custom_call.1}
  #allocation0 [shape = 'u32[]', space=smem, size = 0x4, offset = 0x4, fixed_abs, tag = 'smem constant byte address 0x4 - core index']
  #allocation1 [shape = 'u32[72,128]{1,0:T(1,128)}', space=vmem, size = 0x9000, scoped, tag = 'internal scratch']
  %s0 = inlined_call_operand.hbm [shape: f32[8,256], index: 0, kind: input, shape index: {}]
  %s1 = inlined_call_operand.hbm [shape: f32[8,256], index: 1, kind: input, shape index: {}]
  %s2 = inlined_call_operand.hbm [shape: f32[256,128], index: 2, kind: input, shape index: {}]
  %s3 = inlined_call_operand.vmem [shape: f32[1,128], index: 3, kind: input, shape index: {}]
  %s4 = inlined_call_operand.hbm [shape: f32[1,1,256], index: 4, kind: output, shape index: {0}]
  %s5 = inlined_call_operand.hbm [shape: f32[1,1,128], index: 5, kind: output, shape index: {1}]
  %6 = xla_tuple %s4, %s5
  %s7 = sld [smem:[#allocation0]]
  $region46: #{tpu_custom_call.1} parent=0
    _
  %s9 = ssub.s32 1, %s7
  %s10 = scalar_select 0, %s9, %s7
  $region1: #{tpu_custom_call.1} parent=0
    #allocation2 [shape = 'u8[8192]{0}', space=vmem, size = 0x2000, scoped, tag = 'input window, operand 0, single buffered']
    #allocation3 [shape = 's32[1]{0}', space=sflag, size = 0x4, scoped, tag = 'scoped memory for tpu_custom_call.1']
    #allocation4 [shape = 's32[1]{0}', space=sflag, size = 0x4, scoped, tag = 'scoped memory for tpu_custom_call.1']
    #allocation5 [shape = 'u8[8192]{0}', space=vmem, size = 0x2000, scoped, tag = 'input window, operand 1, single buffered']
    #allocation6 [shape = 's32[1]{0}', space=sflag, size = 0x4, scoped, tag = 'scoped memory for tpu_custom_call.1']
    #allocation7 [shape = 'u8[131072]{0}', space=vmem, size = 0x20000, scoped, tag = 'input window, operand 2, single buffered']
    #allocation8 [shape = 'u8[1024]{0}', space=vmem, size = 0x400, scoped, tag = 'output window, operand 0, single buffered']
    #allocation9 [shape = 'u8[512]{0}', space=vmem, size = 0x400, scoped, tag = 'output window, operand 1, single buffered']
    #allocation10 [shape = 's32[1]{0}', space=sflag, size = 0x4, scoped, tag = 'scoped memory for tpu_custom_call.1']
    %11 = vsyncpa [#allocation3], 0
    %12 = vsyncpa [#allocation6], 0
    %13 = vsyncpa [#allocation4], 0
    %14 = vsyncpa [#allocation10], 0
    // Predicated region
    $region2: #{tpu_custom_call.1} parent=1 // pred_check
      _
    $region3: #{tpu_custom_call.1} parent=1 // pred_check_branch
      %16 = sbr.rel (0) target = $region5
    $region4: #{tpu_custom_call.1} parent=1 // pred_region
      %18 = vsyncadd [#allocation3], 0
      %s20 = sshll.u32 %s0, 4
      %s21 = int_to_ptr.hbm [resolvable:$true] %s20
      %s22 = sshll.u32 [#allocation2], 4
      %s23 = int_to_ptr.vmem [resolvable:$true] %s22
      %25 = dma.hbm_to_vmem [thread:$0]  %s21, 256, %s23, [#allocation3]
    $region5: #{tpu_custom_call.1} parent=1 // pred_fallthru
      _
    // Predicated region
    $region6: #{tpu_custom_call.1} parent=1 // pred_check
      _
    $region7: #{tpu_custom_call.1} parent=1 // pred_check_branch
      %27 = sbr.rel (0) target = $region9
    $region8: #{tpu_custom_call.1} parent=1 // pred_region
      %29 = vsyncadd [#allocation6], 0
      %s31 = sshll.u32 %s1, 4
      %s32 = int_to_ptr.hbm [resolvable:$true] %s31
      %s33 = sshll.u32 [#allocation5], 4
      %s34 = int_to_ptr.vmem [resolvable:$true] %s33
      %36 = dma.hbm_to_vmem [thread:$0]  %s32, 256, %s34, [#allocation6]
    $region9: #{tpu_custom_call.1} parent=1 // pred_fallthru
      _
    // Predicated region
    $region10: #{tpu_custom_call.1} parent=1 // pred_check
      _
    $region11: #{tpu_custom_call.1} parent=1 // pred_check_branch
      %38 = sbr.rel (0) target = $region13
    $region12: #{tpu_custom_call.1} parent=1 // pred_region
      %40 = vsyncadd [#allocation6], 0
      %s41 = sshll.u32 %s2, 4
      %s42 = int_to_ptr.hbm [resolvable:$true] %s41
      %s43 = sshll.u32 [#allocation7], 4
      %s44 = int_to_ptr.vmem [resolvable:$true] %s43
      %49 = dma.hbm_to_vmem [thread:$0]  %s42, 4096, %s44, [#allocation6], 128, 128, 8
    $region13: #{tpu_custom_call.1} parent=1 // pred_fallthru
      _
    // Predicated region
    $region14: #{tpu_custom_call.1} parent=1 // pred_check
      _
    $region15: #{tpu_custom_call.1} parent=1 // pred_check_branch
      %51 = sbr.rel (0) target = $region17
    $region16: #{tpu_custom_call.1} parent=1 // pred_region
      _
    $region17: #{tpu_custom_call.1} parent=1 // pred_fallthru
      _
    // Predicated region
    $region18: #{tpu_custom_call.1} parent=1 // pred_check
      _
    $region19: #{tpu_custom_call.1} parent=1 // pred_check_branch
      %53 = sbr.rel (0) target = $region21
    $region20: #{tpu_custom_call.1} parent=1 // pred_region
      %55 = dma.done [#allocation3], 256
    $region21: #{tpu_custom_call.1} parent=1 // pred_fallthru
      _
    // Predicated region
    $region22: #{tpu_custom_call.1} parent=1 // pred_check
      _
    $region23: #{tpu_custom_call.1} parent=1 // pred_check_branch
      %57 = sbr.rel (0) target = $region25
    $region24: #{tpu_custom_call.1} parent=1 // pred_region
      %59 = dma.done [#allocation6], 256
    $region25: #{tpu_custom_call.1} parent=1 // pred_fallthru
      _
    // Predicated region
    $region26: #{tpu_custom_call.1} parent=1 // pred_check
      _
    $region27: #{tpu_custom_call.1} parent=1 // pred_check_branch
      %61 = sbr.rel (0) target = $region29
    $region28: #{tpu_custom_call.1} parent=1 // pred_region
      %63 = dma.done [#allocation6], 4096
    $region29: #{tpu_custom_call.1} parent=1 // pred_fallthru
      _
    %v64 = vld [vmem:[#allocation2] sm:$0xff]
    %v65 = vld [vmem:[#allocation2 + $0x8] sm:$0xff]
    %v66 = vld [vmem:[#allocation5] sm:$0xff]
    %v67 = vld [vmem:[#allocation5 + $0x8] sm:$0xff]
    %v68 = vsub.f32 %v64, %v66
    %v69 = vsub.f32 %v65, %v67
    %v70 = vand.u32 2147483647, %v68
    %v71 = vand.u32 2147483647, %v69
    %v72 = vrot.slane %v70, 4
    %v73 = vadd.f32 %v70, %v72
    %v74 = vrot.slane %v73, 2
    %v75 = vadd.f32 %v73, %v74
    %v76 = vrot.slane %v75, 1
    %v77 = vadd.f32 %v75, %v76
    %v78 = vrot.slane %v71, 4
    %v79 = vadd.f32 %v71, %v78
    %v80 = vrot.slane %v79, 2
    %v81 = vadd.f32 %v79, %v80
    %v82 = vrot.slane %v81, 1
    %v83 = vadd.f32 %v81, %v82
    %v86 = vrot.slane %v83, 7
    %vm87 = vcmask 1040384
    %v88 = vsel %vm87, %v77, %v86
    %v90 = vlaneseq
    %vm91 = vcmp.ge.s32.totalorder %v90, 0
    %vm92 = vcmp.lt.s32.totalorder %v90, 256
    %vm93 = vmand %vm91, %vm92
    %94 = vst.msk [vmem:[#allocation8] sm:$0x3] %vm93, %v88
    %v95 = vld [vmem:[#allocation7] sm:$0xff]
    %v96 = vld [vmem:[#allocation7 + $0x8] sm:$0xff]
    %v97 = vld [vmem:[#allocation7 + $0x10] sm:$0xff]
    %v98 = vld [vmem:[#allocation7 + $0x18] sm:$0xff]
    %v99 = vld [vmem:[#allocation7 + $0x20] sm:$0xff]
    %v100 = vld [vmem:[#allocation7 + $0x28] sm:$0xff]
    %v101 = vld [vmem:[#allocation7 + $0x30] sm:$0xff]
    %v102 = vld [vmem:[#allocation7 + $0x38] sm:$0xff]
    %v103 = vld [vmem:[#allocation7 + $0x40] sm:$0xff]
    %v104 = vld [vmem:[#allocation7 + $0x48] sm:$0xff]
    %v105 = vld [vmem:[#allocation7 + $0x50] sm:$0xff]
    %v106 = vld [vmem:[#allocation7 + $0x58] sm:$0xff]
    %v107 = vld [vmem:[#allocation7 + $0x60] sm:$0xff]
    %v108 = vld [vmem:[#allocation7 + $0x68] sm:$0xff]
    %v109 = vld [vmem:[#allocation7 + $0x70] sm:$0xff]
    %v110 = vld [vmem:[#allocation7 + $0x78] sm:$0xff]
    %v111 = vld [vmem:[#allocation7 + $0x80] sm:$0xff]
    %v112 = vld [vmem:[#allocation7 + $0x88] sm:$0xff]
    %v113 = vld [vmem:[#allocation7 + $0x90] sm:$0xff]
    %v114 = vld [vmem:[#allocation7 + $0x98] sm:$0xff]
    %v115 = vld [vmem:[#allocation7 + $0xa0] sm:$0xff]
    %v116 = vld [vmem:[#allocation7 + $0xa8] sm:$0xff]
    %v117 = vld [vmem:[#allocation7 + $0xb0] sm:$0xff]
    %v118 = vld [vmem:[#allocation7 + $0xb8] sm:$0xff]
    %v119 = vld [vmem:[#allocation7 + $0xc0] sm:$0xff]
    %v120 = vld [vmem:[#allocation7 + $0xc8] sm:$0xff]
    %v121 = vld [vmem:[#allocation7 + $0xd0] sm:$0xff]
    %v122 = vld [vmem:[#allocation7 + $0xd8] sm:$0xff]
    %v123 = vld [vmem:[#allocation7 + $0xe0] sm:$0xff]
    %v124 = vld [vmem:[#allocation7 + $0xe8] sm:$0xff]
    %v125 = vld [vmem:[#allocation7 + $0xf0] sm:$0xff]
    %v126 = vld [vmem:[#allocation7 + $0xf8] sm:$0xff]
    %127 = vmatpush.msra.mxu0 %v110
    %128 = vmatpush.msra.mxu0 %v109
    %129 = vmatpush.msra.mxu0 %v108
    %130 = vmatpush.msra.mxu0 %v107
    %131 = vmatpush.msra.mxu0 %v106
    %132 = vmatpush.msra.mxu0 %v105
    %133 = vmatpush.msra.mxu0 %v104
    %134 = vmatpush.msra.mxu0 %v103
    %135 = vmatpush.msra.mxu0 %v102
    %136 = vmatpush.msra.mxu0 %v101
    %137 = vmatpush.msra.mxu0 %v100
    %138 = vmatpush.msra.mxu0 %v99
    %139 = vmatpush.msra.mxu0 %v98
    %140 = vmatpush.msra.mxu0 %v97
    %141 = vmatpush.msra.mxu0 %v96
    %142 = vmatpush.msra.mxu0 %v95
    %143 = vmatmul.f32.gmra.mxu0 %v68
    %v144 = vpop.f32.mrf.mxu0
    %v145 = vadd.f32 0.0, %v144
    %146 = vdwg.mxu0
    %147 = vmatpush.msra.mxu0 %v126
    %148 = vmatpush.msra.mxu0 %v125
    %149 = vmatpush.msra.mxu0 %v124
    %150 = vmatpush.msra.mxu0 %v123
    %151 = vmatpush.msra.mxu0 %v122
    %152 = vmatpush.msra.mxu0 %v121
    %153 = vmatpush.msra.mxu0 %v120
    %154 = vmatpush.msra.mxu0 %v119
    %155 = vmatpush.msra.mxu0 %v118
    %156 = vmatpush.msra.mxu0 %v117
    %157 = vmatpush.msra.mxu0 %v116
    %158 = vmatpush.msra.mxu0 %v115
    %159 = vmatpush.msra.mxu0 %v114
    %160 = vmatpush.msra.mxu0 %v113
    %161 = vmatpush.msra.mxu0 %v112
    %162 = vmatpush.msra.mxu0 %v111
    %163 = vmatmul.f32.gmra.mxu0 %v69
    %v164 = vpop.f32.mrf.mxu0
    %v165 = vadd.f32 %v145, %v164
    %166 = vdwg.mxu0
    %v167 = vand.u32 2147483647, %v165
    %v168 = vld [vmem:[%s3] sm:$0x1]
    %v170 = vperm.slane %v168, 0
    %v172 = vmul.f32 %v167, %v170
    %v173 = vrot.slane %v172, 4
    %v174 = vadd.f32 %v172, %v173
    %v175 = vrot.slane %v174, 2
    %v176 = vadd.f32 %v174, %v175
    %v177 = vrot.slane %v176, 1
    %v178 = vadd.f32 %v176, %v177
    %179 = vst [vmem:[#allocation9] sm:$0x1] %v178
    // Predicated region
    $region30: #{tpu_custom_call.1} parent=1 // pred_check
      _
    $region31: #{tpu_custom_call.1} parent=1 // pred_check_branch
      %181 = sbr.rel (0) target = $region33
    $region32: #{tpu_custom_call.1} parent=1 // pred_region
      %183 = vsyncadd [#allocation4], 0
      %s185 = sshll.u32 [#allocation8], 4
      %s186 = int_to_ptr.vmem [resolvable:$true] %s185
      %s187 = sshll.u32 %s4, 4
      %s188 = int_to_ptr.hbm [resolvable:$true] %s187
      %190 = dma.vmem_to_hbm [thread:$0]  %s186, 32, %s188, [#allocation4]
    $region33: #{tpu_custom_call.1} parent=1 // pred_fallthru
      _
    // Predicated region
    $region34: #{tpu_custom_call.1} parent=1 // pred_check
      _
    $region35: #{tpu_custom_call.1} parent=1 // pred_check_branch
      %192 = sbr.rel (0) target = $region37
    $region36: #{tpu_custom_call.1} parent=1 // pred_region
      %194 = vsyncadd [#allocation10], 0
      %s196 = sshll.u32 [#allocation9], 4
      %s197 = int_to_ptr.vmem [resolvable:$true] %s196
      %s198 = sshll.u32 %s5, 4
      %s199 = int_to_ptr.hbm [resolvable:$true] %s198
      %201 = dma.vmem_to_hbm [thread:$0]  %s197, 16, %s199, [#allocation10]
    $region37: #{tpu_custom_call.1} parent=1 // pred_fallthru
      _
    // Predicated region
    $region38: #{tpu_custom_call.1} parent=1 // pred_check
      _
    $region39: #{tpu_custom_call.1} parent=1 // pred_check_branch
      %203 = sbr.rel (0) target = $region41
    $region40: #{tpu_custom_call.1} parent=1 // pred_region
      %205 = dma.done [#allocation4], 32
    $region41: #{tpu_custom_call.1} parent=1 // pred_fallthru
      _
    // Predicated region
    $region42: #{tpu_custom_call.1} parent=1 // pred_check
      _
    $region43: #{tpu_custom_call.1} parent=1 // pred_check_branch
      %207 = sbr.rel (0) target = $region45
    $region44: #{tpu_custom_call.1} parent=1 // pred_region
      %209 = dma.done [#allocation10], 16
    $region45: #{tpu_custom_call.1} parent=1 // pred_fallthru
      _
    %210 = vsyncpa [#allocation3], 1
    %211 = vsyncpa [#allocation6], 1
    %212 = vsyncpa [#allocation4], 1
    %213 = vsyncpa [#allocation10], 1

</llo_original>
